<compile_context>
chip_gen: v7x
topology: tpu7x:2x2x1
jax: 0.10.0
libtpu: 0.0.40
codegen_flags: <defaults>
</compile_context>

<pallas_src>
import math
import functools

import jax
import jax.numpy as jnp
from jax.experimental import pallas as pl
from jax.experimental.pallas import tpu as pltpu


# ------------------------------- kernels -------------------------------

def _noisy_linear_kernel(x_ref, wmu_ref, wsig_ref, ein_ref, eout_ref, b_ref,
                         o_ref, acc_ref, *, mxu_bf16):
    k = pl.program_id(2)

    @pl.when(k == 0)
    def _init():
        acc_ref[...] = jnp.zeros_like(acc_ref)

    # Noisy weight tile built from the rank-1 factorized noise on the VPU (f32):
    #   (tk, tn) = wmu + wsig * (eps_in[:,None] * eps_out[None,:])
    w = wmu_ref[...] + wsig_ref[...] * (ein_ref[...] * eout_ref[...])
    x = x_ref[...]
    if mxu_bf16:
        w = w.astype(jnp.bfloat16)
        x = x.astype(jnp.bfloat16)
    acc_ref[...] += jnp.dot(x, w, preferred_element_type=jnp.float32)

    @pl.when(k == pl.num_programs(2) - 1)
    def _finalize():
        o_ref[...] = (acc_ref[...] + b_ref[...]).astype(o_ref.dtype)


def _mu_linear_kernel(x_ref, wmu_ref, b_ref, o_ref, acc_ref, *, mxu_bf16):
    # Eval path: plain x @ W_mu + b_mu, only one weight matrix streamed from HBM.
    k = pl.program_id(2)

    @pl.when(k == 0)
    def _init():
        acc_ref[...] = jnp.zeros_like(acc_ref)

    w = wmu_ref[...]
    x = x_ref[...]
    if mxu_bf16:
        w = w.astype(jnp.bfloat16)
        x = x.astype(jnp.bfloat16)
    acc_ref[...] += jnp.dot(x, w, preferred_element_type=jnp.float32)

    @pl.when(k == pl.num_programs(2) - 1)
    def _finalize():
        o_ref[...] = (acc_ref[...] + b_ref[...]).astype(o_ref.dtype)


# ------------------------------- wrapper -------------------------------

def _round_up(x, m):
    return ((x + m - 1) // m) * m


def _pad2(a, rows, cols):
    pr, pc = rows - a.shape[0], cols - a.shape[1]
    if pr or pc:
        a = jnp.pad(a, ((0, pr), (0, pc)))
    return a


def _pick_tiles(B, in_f, out_f):
    # Caps keep double-buffered f32 tiles (<~3 MiB total) well inside every
    # generation's scoped VMEM, including v7x's 64 MiB physical / 32 MiB default.
    tm = min(256, _round_up(B, 8))
    tn = min(256, _round_up(out_f, 128))
    tk = min(512, _round_up(in_f, 128))
    return tm, tn, tk


def noisy_linear(x, weight_mu, weight_sigma, eps_in, eps_out,
                 bias_mu, bias_sigma, *, training=True, mxu_bf16=False):
    """Fused NoisyLinear forward.

    x: (B, in_features) f32
    weight_mu / weight_sigma: (out_features, in_features)  (PyTorch layout)
    eps_in: (in_features,), eps_out: (out_features,)  -- factorized noise; the module's
      weight_epsilon == outer(eps_out, eps_in) and bias_epsilon == eps_out.
    """
    B, in_f = x.shape
    out_f = weight_mu.shape[0]

    tm, tn, tk = _pick_tiles(B, in_f, out_f)
    Mp, Kp, Np = _round_up(B, tm), _round_up(in_f, tk), _round_up(out_f, tn)
    grid = (Mp // tm, Np // tn, Kp // tk)

    # One-time layout plumbing (outside the hot loop): pad and pre-transpose to (K, N)
    # so the kernel never transposes on the XLU.
    xp = _pad2(x, Mp, Kp)
    wmu_t = _pad2(weight_mu.T, Kp, Np)

    x_spec = pl.BlockSpec((tm, tk), lambda i, j, k: (i, k))
    w_spec = pl.BlockSpec((tk, tn), lambda i, j, k: (k, j))
    col_spec = pl.BlockSpec((tk, 1), lambda i, j, k: (k, 0))
    row_spec = pl.BlockSpec((1, tn), lambda i, j, k: (0, j))
    out_spec = pl.BlockSpec((tm, tn), lambda i, j, k: (i, j))

    cp = pltpu.CompilerParams(
        dimension_semantics=("parallel", "parallel", "arbitrary"))
    scratch = [pltpu.VMEM((tm, tn), jnp.float32)]
    out_shape = jax.ShapeDtypeStruct((Mp, Np), x.dtype)

    if training:
        wsig_t = _pad2(weight_sigma.T, Kp, Np)
        ein_col = _pad2(eps_in.reshape(in_f, 1), Kp, 1)
        eout_row = _pad2(eps_out.reshape(1, out_f), 1, Np)
        # Effective bias is O(out): build it in the wrapper, add once on the last K step.
        b_eff = _pad2((bias_mu + bias_sigma * eps_out).reshape(1, out_f), 1, Np)
        yp = pl.pallas_call(
            functools.partial(_noisy_linear_kernel, mxu_bf16=mxu_bf16),
            out_shape=out_shape,
            grid=grid,
            in_specs=[x_spec, w_spec, w_spec, col_spec, row_spec, row_spec],
            out_specs=out_spec,
            scratch_shapes=scratch,
            compiler_params=cp,
        )(xp, wmu_t, wsig_t, ein_col, eout_row, b_eff)
    else:
        b_mu = _pad2(bias_mu.reshape(1, out_f), 1, Np)
        yp = pl.pallas_call(
            functools.partial(_mu_linear_kernel, mxu_bf16=mxu_bf16),
            out_shape=out_shape,
            grid=grid,
            in_specs=[x_spec, w_spec, row_spec],
            out_specs=out_spec,
            scratch_shapes=scratch,
            compiler_params=cp,
        )(xp, wmu_t, b_mu)

    return yp[:B, :out_f]


# ------------- deterministic parameter / noise construction (glue) -------------
# TODO(synk): noise generation / init are plain JAX glue, matching the PyTorch
# reset_parameters()/reset_noise(); they could also be generated in-kernel with
# pltpu.prng_* to avoid the eps-vector HBM reads.

def _scale_noise(key, size):
    x = jax.random.normal(key, (size,), dtype=jnp.float32)
    return jnp.sign(x) * jnp.sqrt(jnp.abs(x))


def init_noisy_linear(key, in_features, out_features, std_init=0.5):
    k_wmu, k_bmu, k_ein, k_eout = jax.random.split(key, 4)
    mu_range = 1.0 / math.sqrt(in_features)

    weight_mu = jax.random.uniform(k_wmu, (out_features, in_features),
                                   minval=-mu_range, maxval=mu_range, dtype=jnp.float32)
    weight_sigma = jnp.full((out_features, in_features),
                            std_init / math.sqrt(in_features), dtype=jnp.float32)
    bias_mu = jax.random.uniform(k_bmu, (out_features,),
                                 minval=-mu_range, maxval=mu_range, dtype=jnp.float32)
    bias_sigma = jnp.full((out_features,),
                          std_init / math.sqrt(out_features), dtype=jnp.float32)

    eps_in = _scale_noise(k_ein, in_features)     # factorized noise (rank-1)
    eps_out = _scale_noise(k_eout, out_features)

    return dict(weight_mu=weight_mu, weight_sigma=weight_sigma,
                bias_mu=bias_mu, bias_sigma=bias_sigma,
                eps_in=eps_in, eps_out=eps_out)


def _reference(x, p, training):
    hi = jax.lax.Precision.HIGHEST
    if training:
        w_eff = p["weight_mu"] + p["weight_sigma"] * jnp.outer(p["eps_out"], p["eps_in"])
        b_eff = p["bias_mu"] + p["bias_sigma"] * p["eps_out"]
    else:
        w_eff, b_eff = p["weight_mu"], p["bias_mu"]
    return jnp.dot(x, w_eff.T, precision=hi, preferred_element_type=jnp.float32) + b_eff


if __name__ == "__main__":
    key = jax.random.PRNGKey(0)
    k_params, k_x, k_params2, k_x2 = jax.random.split(key, 4)

    # --- small demo shape (matches the module: a plain linear layer) ---
    batch, in_features, out_features = 8, 32, 16
    params = init_noisy_linear(k_params, in_features, out_features, std_init=0.5)
    x = jax.random.normal(k_x, (batch, in_features), dtype=jnp.float32)

    fwd_train = jax.jit(functools.partial(noisy_linear, training=True))
    y = fwd_train(x, params["weight_mu"], params["weight_sigma"],
                  params["eps_in"], params["eps_out"],
                  params["bias_mu"], params["bias_sigma"])
    jax.block_until_ready(y)
    assert y.shape == (batch, out_features)
    assert jnp.allclose(y, _reference(x, params, True), atol=1e-5, rtol=1e-5)

    # --- eval path (mu-only kernel) ---
    fwd_eval = jax.jit(functools.partial(noisy_linear, training=False))
    y_eval = fwd_eval(x, params["weight_mu"], params["weight_sigma"],
                      params["eps_in"], params["eps_out"],
                      params["bias_mu"], params["bias_sigma"])
    jax.block_until_ready(y_eval)
    assert jnp.allclose(y_eval, _reference(x, params, False), atol=1e-5, rtol=1e-5)

    # --- optional bf16 MXU path (looser tolerance) ---
    y_bf16 = noisy_linear(x, params["weight_mu"], params["weight_sigma"],
                          params["eps_in"], params["eps_out"],
                          params["bias_mu"], params["bias_sigma"],
                          training=True, mxu_bf16=True)
    jax.block_until_ready(y_bf16)
    assert jnp.allclose(y_bf16, _reference(x, params, True), atol=5e-2, rtol=5e-2)

    # --- shape that exercises the K-reduction grid axis (multi-tile accumulation) ---
    b2, in2, out2 = 16, 640, 144
    params2 = init_noisy_linear(k_params2, in2, out2, std_init=0.5)
    x2 = jax.random.normal(k_x2, (b2, in2), dtype=jnp.float32)
    y2 = jax.jit(functools.partial(noisy_linear, training=True))(
        x2, params2["weight_mu"], params2["weight_sigma"],
        params2["eps_in"], params2["eps_out"],
        params2["bias_mu"], params2["bias_sigma"])
    jax.block_until_ready(y2)
    assert y2.shape == (b2, out2)
    assert jnp.allclose(y2, _reference(x2, params2, True), atol=2e-3, rtol=2e-3)

    print("KERNEL_OK")
</pallas_src>

<mosaic_0001>
module attributes {stable_mosaic.version = 11 : i64} {
  func.func @_noisy_linear_kernel(%arg0: i32, %arg1: i32, %arg2: i32, %arg3: memref<8x128xf32, #tpu.memory_space<vmem>>, %arg4: memref<128x128xf32, #tpu.memory_space<vmem>>, %arg5: memref<128x128xf32, #tpu.memory_space<vmem>>, %arg6: memref<128x1xf32, #tpu.memory_space<vmem>>, %arg7: memref<1x128xf32, #tpu.memory_space<vmem>>, %arg8: memref<1x128xf32, #tpu.memory_space<vmem>>, %arg9: memref<8x128xf32, #tpu.memory_space<vmem>>, %arg10: memref<8x128xf32, #tpu.memory_space<vmem>>) attributes {dimension_semantics = [#tpu.dimension_semantics<parallel>, #tpu.dimension_semantics<parallel>, #tpu.dimension_semantics<arbitrary>], iteration_bounds = array<i64: 1, 1, 1>, scalar_prefetch = 0 : i64, scratch_operands = 1 : i64, tpu.core_type = #tpu.core_type<tc>, window_params = [{transform_indices = @transform_0, window_bounds = array<i64: 8, 128>}, {transform_indices = @transform_1, window_bounds = array<i64: 128, 128>}, {transform_indices = @transform_2, window_bounds = array<i64: 128, 128>}, {transform_indices = @transform_3, window_bounds = array<i64: 128, 1>}, {transform_indices = @transform_4, window_bounds = array<i64: 1, 128>}, {transform_indices = @transform_5, window_bounds = array<i64: 1, 128>}, {transform_indices = @transform_6, window_bounds = array<i64: 8, 128>}]} {
    %c0_i32 = arith.constant 0 : i32
    %0 = arith.cmpi eq, %arg2, %c0_i32 : i32
    %1 = arith.extui %0 : i1 to i32
    %c0_i32_0 = arith.constant 0 : i32
    %2 = arith.cmpi ne, %1, %c0_i32_0 : i32
    scf.if %2 {
      %cst_16 = arith.constant 0.000000e+00 : f32
      %20 = vector.broadcast %cst_16 : f32 to vector<8x128xf32>
      %c0_17 = arith.constant 0 : index
      %c0_18 = arith.constant 0 : index
      %21 = vector.load %arg10[%c0_17, %c0_18] : memref<8x128xf32, #tpu.memory_space<vmem>>, vector<8x128xf32>
      tpu.vector_store %arg10[%c0_17, %c0_18], %20 {strides = array<i32>} : memref<8x128xf32, #tpu.memory_space<vmem>>, vector<8x128xf32>,
    } else {
    }
    %c0 = arith.constant 0 : index
    %c0_1 = arith.constant 0 : index
    %3 = vector.load %arg4[%c0, %c0_1] : memref<128x128xf32, #tpu.memory_space<vmem>>, vector<128x128xf32>
    %c0_2 = arith.constant 0 : index
    %c0_3 = arith.constant 0 : index
    %4 = vector.load %arg5[%c0_2, %c0_3] : memref<128x128xf32, #tpu.memory_space<vmem>>, vector<128x128xf32>
    %c0_4 = arith.constant 0 : index
    %c0_5 = arith.constant 0 : index
    %5 = vector.load %arg6[%c0_4, %c0_5] : memref<128x1xf32, #tpu.memory_space<vmem>>, vector<128x1xf32>
    %c0_6 = arith.constant 0 : index
    %c0_7 = arith.constant 0 : index
    %6 = vector.load %arg7[%c0_6, %c0_7] : memref<1x128xf32, #tpu.memory_space<vmem>>, vector<1x128xf32>
    %7 = vector.broadcast %5 : vector<128x1xf32> to vector<128x128xf32>
    %8 = vector.broadcast %6 : vector<1x128xf32> to vector<128x128xf32>
    %9 = arith.mulf %7, %8 : vector<128x128xf32>
    %10 = arith.mulf %4, %9 : vector<128x128xf32>
    %11 = arith.addf %3, %10 : vector<128x128xf32>
    %c0_8 = arith.constant 0 : index
    %c0_9 = arith.constant 0 : index
    %12 = vector.load %arg3[%c0_8, %c0_9] : memref<8x128xf32, #tpu.memory_space<vmem>>, vector<8x128xf32>
    %c0_10 = arith.constant 0 : index
    %c0_11 = arith.constant 0 : index
    %13 = vector.load %arg10[%c0_10, %c0_11] : memref<8x128xf32, #tpu.memory_space<vmem>>, vector<8x128xf32>
    %cst = arith.constant dense<0.000000e+00> : vector<8x128xf32>
    %14 = tpu.matmul %12, %11, %cst {dimension_numbers = #tpu.dot_dimension_numbers<[1], [0], [0], [1], [0, 0, 1, 1], [], []>} : vector<8x128xf32>, vector<128x128xf32>, vector<8x128xf32> -> vector<8x128xf32>
    %15 = arith.addf %13, %14 : vector<8x128xf32>
    %c0_12 = arith.constant 0 : index
    %c0_13 = arith.constant 0 : index
    %16 = vector.load %arg10[%c0_12, %c0_13] : memref<8x128xf32, #tpu.memory_space<vmem>>, vector<8x128xf32>
    tpu.vector_store %arg10[%c0_12, %c0_13], %15 {strides = array<i32>} : memref<8x128xf32, #tpu.memory_space<vmem>>, vector<8x128xf32>,
    %c0_i32_14 = arith.constant 0 : i32
    %17 = arith.cmpi eq, %arg2, %c0_i32_14 : i32
    %18 = arith.extui %17 : i1 to i32
    %c0_i32_15 = arith.constant 0 : i32
    %19 = arith.cmpi ne, %18, %c0_i32_15 : i32
    scf.if %19 {
      %c0_16 = arith.constant 0 : index
      %c0_17 = arith.constant 0 : index
      %20 = vector.load %arg10[%c0_16, %c0_17] : memref<8x128xf32, #tpu.memory_space<vmem>>, vector<8x128xf32>
      %c0_18 = arith.constant 0 : index
      %c0_19 = arith.constant 0 : index
      %21 = vector.load %arg8[%c0_18, %c0_19] : memref<1x128xf32, #tpu.memory_space<vmem>>, vector<1x128xf32>
      %22 = vector.broadcast %21 : vector<1x128xf32> to vector<8x128xf32>
      %23 = arith.addf %20, %22 : vector<8x128xf32>
      %c0_20 = arith.constant 0 : index
      %c0_21 = arith.constant 0 : index
      %24 = vector.load %arg9[%c0_20, %c0_21] : memref<8x128xf32, #tpu.memory_space<vmem>>, vector<8x128xf32>
      tpu.vector_store %arg9[%c0_20, %c0_21], %23 {strides = array<i32>} : memref<8x128xf32, #tpu.memory_space<vmem>>, vector<8x128xf32>,
    } else {
    }
    return
  }
  func.func @transform_0(%arg0: i32, %arg1: i32, %arg2: i32) -> (i32, i32) {
    %c0_i32 = arith.constant 0 : i32
    return %arg0, %arg2 : i32, i32
  }
  func.func @transform_1(%arg0: i32, %arg1: i32, %arg2: i32) -> (i32, i32) {
    %c0_i32 = arith.constant 0 : i32
    return %arg2, %arg1 : i32, i32
  }
  func.func @transform_2(%arg0: i32, %arg1: i32, %arg2: i32) -> (i32, i32) {
    %c0_i32 = arith.constant 0 : i32
    return %arg2, %arg1 : i32, i32
  }
  func.func @transform_3(%arg0: i32, %arg1: i32, %arg2: i32) -> (i32, i32) {
    %c0_i32 = arith.constant 0 : i32
    %c0_i32_0 = arith.constant 0 : i32
    return %arg2, %c0_i32 : i32, i32
  }
  func.func @transform_4(%arg0: i32, %arg1: i32, %arg2: i32) -> (i32, i32) {
    %c0_i32 = arith.constant 0 : i32
    %c0_i32_0 = arith.constant 0 : i32
    return %c0_i32, %arg1 : i32, i32
  }
  func.func @transform_5(%arg0: i32, %arg1: i32, %arg2: i32) -> (i32, i32) {
    %c0_i32 = arith.constant 0 : i32
    %c0_i32_0 = arith.constant 0 : i32
    return %c0_i32, %arg1 : i32, i32
  }
  func.func @transform_6(%arg0: i32, %arg1: i32, %arg2: i32) -> (i32, i32) {
    %c0_i32 = arith.constant 0 : i32
    return %arg0, %arg1 : i32, i32
  }
}

</mosaic_0001>

<llo_original>
// kernel: noisy_linear.1
$region0: #{noisy_linear.1}
  #allocation0 [shape = 'u32[]', space=smem, size = 0x4, offset = 0x4, fixed_abs, tag = 'smem constant byte address 0x4 - core index']
  #allocation1 [shape = 'u32[144,128]{1,0:T(1,128)}', space=vmem, size = 0x12000, scoped, tag = 'internal scratch']
  #allocation2 [shape = 'f32[8,128]{1,0:T(8,128)}', space=vmem, size = 0x1000, scoped, tag = 'scratch operand']
  %s0 = inlined_call_operand.vmem [shape: f32[8,128], index: 0, kind: input, shape index: {}]
  %s1 = inlined_call_operand.vmem [shape: f32[128,128], index: 1, kind: input, shape index: {}]
  %s2 = inlined_call_operand.vmem [shape: f32[128,128], index: 2, kind: input, shape index: {}]
  %s3 = inlined_call_operand.vmem [shape: f32[128,1], index: 3, kind: input, shape index: {}]
  %s4 = inlined_call_operand.vmem [shape: f32[1,128], index: 4, kind: input, shape index: {}]
  %s5 = inlined_call_operand.vmem [shape: f32[1,128], index: 5, kind: input, shape index: {}]
  %s6 = inlined_call_operand.hbm [shape: f32[8,128], index: 6, kind: output, shape index: {}]
  %s7 = sld [smem:[#allocation0]]
  $region42: #{noisy_linear.1} parent=0
    _
  %s9 = ssub.s32 1, %s7
  %s10 = scalar_select 0, %s9, %s7
  $region1: #{noisy_linear.1} parent=0
    #allocation3 [shape = 'u8[4096]{0}', space=vmem, size = 0x1000, scoped, tag = 'output window, operand 0, single buffered']
    #allocation4 [shape = 's32[1]{0}', space=sflag, size = 0x4, scoped, tag = 'scoped memory for noisy_linear.1']
    %11 = vsyncpa [#allocation4], 0
    // Predicated region
    $region2: #{noisy_linear.1} parent=1 // pred_check
      _
    $region3: #{noisy_linear.1} parent=1 // pred_check_branch
      %13 = sbr.rel (0) target = $region5
    $region4: #{noisy_linear.1} parent=1 // pred_region
      _
    $region5: #{noisy_linear.1} parent=1 // pred_fallthru
      _
    // Predicated region
    $region6: #{noisy_linear.1} parent=1 // pred_check
      _
    $region7: #{noisy_linear.1} parent=1 // pred_check_branch
      %15 = sbr.rel (0) target = $region9
    $region8: #{noisy_linear.1} parent=1 // pred_region
      _
    $region9: #{noisy_linear.1} parent=1 // pred_fallthru
      _
    // Predicated region
    $region10: #{noisy_linear.1} parent=1 // pred_check
      _
    $region11: #{noisy_linear.1} parent=1 // pred_check_branch
      %17 = sbr.rel (0) target = $region13
    $region12: #{noisy_linear.1} parent=1 // pred_region
      _
    $region13: #{noisy_linear.1} parent=1 // pred_fallthru
      _
    // Predicated region
    $region14: #{noisy_linear.1} parent=1 // pred_check
      _
    $region15: #{noisy_linear.1} parent=1 // pred_check_branch
      %19 = sbr.rel (0) target = $region17
    $region16: #{noisy_linear.1} parent=1 // pred_region
      _
    $region17: #{noisy_linear.1} parent=1 // pred_fallthru
      _
    // Predicated region
    $region18: #{noisy_linear.1} parent=1 // pred_check
      _
    $region19: #{noisy_linear.1} parent=1 // pred_check_branch
      %21 = sbr.rel (0) target = $region21
    $region20: #{noisy_linear.1} parent=1 // pred_region
      _
    $region21: #{noisy_linear.1} parent=1 // pred_fallthru
      _
    // Predicated region
    $region22: #{noisy_linear.1} parent=1 // pred_check
      _
    $region23: #{noisy_linear.1} parent=1 // pred_check_branch
      %23 = sbr.rel (0) target = $region25
    $region24: #{noisy_linear.1} parent=1 // pred_region
      _
    $region25: #{noisy_linear.1} parent=1 // pred_fallthru
      _
    %p24 = scmp.eq.s32.totalorder 0, 0
    // Predicated region
    $region26: #{noisy_linear.1} parent=1 // pred_check
      %p25 = pneg %p24
    $region27: #{noisy_linear.1} parent=1 // pred_check_branch
      %27 = sbr.rel (%p25) target = $region29
    $region28: #{noisy_linear.1} parent=1 // pred_region
      %28 = vst [vmem:[#allocation2] sm:$0xff] 0.0
    $region29: #{noisy_linear.1} parent=1 // pred_fallthru
      _
    %v29 = vld [vmem:[%s1] sm:$0xff]
    %v30 = vld [vmem:[%s1 + $0x8] sm:$0xff]
    %v31 = vld [vmem:[%s1 + $0x10] sm:$0xff]
    %v32 = vld [vmem:[%s1 + $0x18] sm:$0xff]
    %v33 = vld [vmem:[%s1 + $0x20] sm:$0xff]
    %v34 = vld [vmem:[%s1 + $0x28] sm:$0xff]
    %v35 = vld [vmem:[%s1 + $0x30] sm:$0xff]
    %v36 = vld [vmem:[%s1 + $0x38] sm:$0xff]
    %v37 = vld [vmem:[%s1 + $0x40] sm:$0xff]
    %v38 = vld [vmem:[%s1 + $0x48] sm:$0xff]
    %v39 = vld [vmem:[%s1 + $0x50] sm:$0xff]
    %v40 = vld [vmem:[%s1 + $0x58] sm:$0xff]
    %v41 = vld [vmem:[%s1 + $0x60] sm:$0xff]
    %v42 = vld [vmem:[%s1 + $0x68] sm:$0xff]
    %v43 = vld [vmem:[%s1 + $0x70] sm:$0xff]
    %v44 = vld [vmem:[%s1 + $0x78] sm:$0xff]
    %v45 = vld [vmem:[%s2] sm:$0xff]
    %v46 = vld [vmem:[%s2 + $0x8] sm:$0xff]
    %v47 = vld [vmem:[%s2 + $0x10] sm:$0xff]
    %v48 = vld [vmem:[%s2 + $0x18] sm:$0xff]
    %v49 = vld [vmem:[%s2 + $0x20] sm:$0xff]
    %v50 = vld [vmem:[%s2 + $0x28] sm:$0xff]
    %v51 = vld [vmem:[%s2 + $0x30] sm:$0xff]
    %v52 = vld [vmem:[%s2 + $0x38] sm:$0xff]
    %v53 = vld [vmem:[%s2 + $0x40] sm:$0xff]
    %v54 = vld [vmem:[%s2 + $0x48] sm:$0xff]
    %v55 = vld [vmem:[%s2 + $0x50] sm:$0xff]
    %v56 = vld [vmem:[%s2 + $0x58] sm:$0xff]
    %v57 = vld [vmem:[%s2 + $0x60] sm:$0xff]
    %v58 = vld [vmem:[%s2 + $0x68] sm:$0xff]
    %v59 = vld [vmem:[%s2 + $0x70] sm:$0xff]
    %v60 = vld [vmem:[%s2 + $0x78] sm:$0xff]
    %v61 = vld [vmem:[%s3] sm:$0xff]
    %v62 = vld [vmem:[%s3 + $0x8] sm:$0xff]
    %v63 = vld [vmem:[%s3 + $0x10] sm:$0xff]
    %v64 = vld [vmem:[%s3 + $0x18] sm:$0xff]
    %v65 = vld [vmem:[%s3 + $0x20] sm:$0xff]
    %v66 = vld [vmem:[%s3 + $0x28] sm:$0xff]
    %v67 = vld [vmem:[%s3 + $0x30] sm:$0xff]
    %v68 = vld [vmem:[%s3 + $0x38] sm:$0xff]
    %v69 = vld [vmem:[%s3 + $0x40] sm:$0xff]
    %v70 = vld [vmem:[%s3 + $0x48] sm:$0xff]
    %v71 = vld [vmem:[%s3 + $0x50] sm:$0xff]
    %v72 = vld [vmem:[%s3 + $0x58] sm:$0xff]
    %v73 = vld [vmem:[%s3 + $0x60] sm:$0xff]
    %v74 = vld [vmem:[%s3 + $0x68] sm:$0xff]
    %v75 = vld [vmem:[%s3 + $0x70] sm:$0xff]
    %v76 = vld [vmem:[%s3 + $0x78] sm:$0xff]
    %v77 = vld [vmem:[%s4] sm:$0x1]
    %79 = vset.pattern.permute.xlu0 0
    %80 = vperm.xlu0 %79, %v61
    %v81 = vpop.permute.xlu0 %80
    %84 = vset.pattern.permute.xlu0 0
    %85 = vperm.xlu0 %84, %v62
    %v86 = vpop.permute.xlu0 %85
    %89 = vset.pattern.permute.xlu0 0
    %90 = vperm.xlu0 %89, %v63
    %v91 = vpop.permute.xlu0 %90
    %94 = vset.pattern.permute.xlu0 0
    %95 = vperm.xlu0 %94, %v64
    %v96 = vpop.permute.xlu0 %95
    %99 = vset.pattern.permute.xlu0 0
    %100 = vperm.xlu0 %99, %v65
    %v101 = vpop.permute.xlu0 %100
    %104 = vset.pattern.permute.xlu0 0
    %105 = vperm.xlu0 %104, %v66
    %v106 = vpop.permute.xlu0 %105
    %109 = vset.pattern.permute.xlu0 0
    %110 = vperm.xlu0 %109, %v67
    %v111 = vpop.permute.xlu0 %110
    %114 = vset.pattern.permute.xlu0 0
    %115 = vperm.xlu0 %114, %v68
    %v116 = vpop.permute.xlu0 %115
    %119 = vset.pattern.permute.xlu0 0
    %120 = vperm.xlu0 %119, %v69
    %v121 = vpop.permute.xlu0 %120
    %124 = vset.pattern.permute.xlu0 0
    %125 = vperm.xlu0 %124, %v70
    %v126 = vpop.permute.xlu0 %125
    %129 = vset.pattern.permute.xlu0 0
    %130 = vperm.xlu0 %129, %v71
    %v131 = vpop.permute.xlu0 %130
    %134 = vset.pattern.permute.xlu0 0
    %135 = vperm.xlu0 %134, %v72
    %v136 = vpop.permute.xlu0 %135
    %139 = vset.pattern.permute.xlu0 0
    %140 = vperm.xlu0 %139, %v73
    %v141 = vpop.permute.xlu0 %140
    %144 = vset.pattern.permute.xlu0 0
    %145 = vperm.xlu0 %144, %v74
    %v146 = vpop.permute.xlu0 %145
    %149 = vset.pattern.permute.xlu0 0
    %150 = vperm.xlu0 %149, %v75
    %v151 = vpop.permute.xlu0 %150
    %154 = vset.pattern.permute.xlu0 0
    %155 = vperm.xlu0 %154, %v76
    %v156 = vpop.permute.xlu0 %155
    %v159 = vlaneseq
    %v160 = vshrl.u32 %v159, 7
    %v161 = vsub.s32 0, %v160
    %v162 = vrot.slane %v77, %v161
    %v164 = vmul.f32 %v81, %v162
    %v165 = vmul.f32 %v86, %v162
    %v166 = vmul.f32 %v91, %v162
    %v167 = vmul.f32 %v96, %v162
    %v168 = vmul.f32 %v101, %v162
    %v169 = vmul.f32 %v106, %v162
    %v170 = vmul.f32 %v111, %v162
    %v171 = vmul.f32 %v116, %v162
    %v172 = vmul.f32 %v121, %v162
    %v173 = vmul.f32 %v126, %v162
    %v174 = vmul.f32 %v131, %v162
    %v175 = vmul.f32 %v136, %v162
    %v176 = vmul.f32 %v141, %v162
    %v177 = vmul.f32 %v146, %v162
    %v178 = vmul.f32 %v151, %v162
    %v179 = vmul.f32 %v156, %v162
    %v180 = vmul.f32 %v45, %v164
    %v181 = vmul.f32 %v46, %v165
    %v182 = vmul.f32 %v47, %v166
    %v183 = vmul.f32 %v48, %v167
    %v184 = vmul.f32 %v49, %v168
    %v185 = vmul.f32 %v50, %v169
    %v186 = vmul.f32 %v51, %v170
    %v187 = vmul.f32 %v52, %v171
    %v188 = vmul.f32 %v53, %v172
    %v189 = vmul.f32 %v54, %v173
    %v190 = vmul.f32 %v55, %v174
    %v191 = vmul.f32 %v56, %v175
    %v192 = vmul.f32 %v57, %v176
    %v193 = vmul.f32 %v58, %v177
    %v194 = vmul.f32 %v59, %v178
    %v195 = vmul.f32 %v60, %v179
    %v196 = vadd.f32 %v29, %v180
    %v197 = vadd.f32 %v30, %v181
    %v198 = vadd.f32 %v31, %v182
    %v199 = vadd.f32 %v32, %v183
    %v200 = vadd.f32 %v33, %v184
    %v201 = vadd.f32 %v34, %v185
    %v202 = vadd.f32 %v35, %v186
    %v203 = vadd.f32 %v36, %v187
    %v204 = vadd.f32 %v37, %v188
    %v205 = vadd.f32 %v38, %v189
    %v206 = vadd.f32 %v39, %v190
    %v207 = vadd.f32 %v40, %v191
    %v208 = vadd.f32 %v41, %v192
    %v209 = vadd.f32 %v42, %v193
    %v210 = vadd.f32 %v43, %v194
    %v211 = vadd.f32 %v44, %v195
    %v212 = vld [vmem:[%s0] sm:$0xff]
    %v213 = vld [vmem:[#allocation2] sm:$0xff]
    %214 = vmatprep.subr.mxu0 0.0
    %215 = vmatpush1.msra.mxu0 %v196
    %216 = vmatprep.subr.mxu0 0.0
    %217 = vmatpush1.msra.mxu0 %v197
    %218 = vmatprep.subr.mxu0 0.0
    %219 = vmatpush1.msra.mxu0 %v198
    %220 = vmatprep.subr.mxu0 0.0
    %221 = vmatpush1.msra.mxu0 %v199
    %222 = vmatprep.subr.mxu0 0.0
    %223 = vmatpush1.msra.mxu0 %v200
    %224 = vmatprep.subr.mxu0 0.0
    %225 = vmatpush1.msra.mxu0 %v201
    %226 = vmatprep.subr.mxu0 0.0
    %227 = vmatpush1.msra.mxu0 %v202
    %228 = vmatprep.subr.mxu0 0.0
    %229 = vmatpush1.msra.mxu0 %v203
    %230 = vmatprep.subr.mxu0 0.0
    %231 = vmatpush1.msra.mxu0 %v204
    %232 = vmatprep.subr.mxu0 0.0
    %233 = vmatpush1.msra.mxu0 %v205
    %234 = vmatprep.subr.mxu0 0.0
    %235 = vmatpush1.msra.mxu0 %v206
    %236 = vmatprep.subr.mxu0 0.0
    %237 = vmatpush1.msra.mxu0 %v207
    %238 = vmatprep.subr.mxu0 0.0
    %239 = vmatpush1.msra.mxu0 %v208
    %240 = vmatprep.subr.mxu0 0.0
    %241 = vmatpush1.msra.mxu0 %v209
    %242 = vmatprep.subr.mxu0 0.0
    %243 = vmatpush1.msra.mxu0 %v210
    %244 = vmatprep.subr.mxu0 0.0
    %245 = vmatpush1.msra.mxu0 %v211
    %246 = vmatprep.subr.mxu0 0.0
    %247 = vmatpush1.msra.mxu0 0.0
    %248 = vmatprep.subr.mxu0 0.0
    %249 = vmatpush1.msra.mxu0 0.0
    %250 = vmatprep.subr.mxu0 0.0
    %251 = vmatpush1.msra.mxu0 0.0
    %252 = vmatprep.subr.mxu0 0.0
    %253 = vmatpush1.msra.mxu0 0.0
    %254 = vmatprep.subr.mxu0 0.0
    %255 = vmatpush1.msra.mxu0 0.0
    %256 = vmatprep.subr.mxu0 0.0
    %257 = vmatpush1.msra.mxu0 0.0
    %258 = vmatprep.subr.mxu0 0.0
    %259 = vmatpush1.msra.mxu0 0.0
    %260 = vmatprep.subr.mxu0 0.0
    %261 = vmatpush1.msra.mxu0 0.0
    %262 = vmatprep.subr.mxu0 0.0
    %263 = vmatpush1.msra.mxu0 0.0
    %264 = vmatprep.subr.mxu0 0.0
    %265 = vmatpush1.msra.mxu0 0.0
    %266 = vmatprep.subr.mxu0 0.0
    %267 = vmatpush1.msra.mxu0 0.0
    %268 = vmatprep.subr.mxu0 0.0
    %269 = vmatpush1.msra.mxu0 0.0
    %270 = vmatprep.subr.mxu0 0.0
    %271 = vmatpush1.msra.mxu0 0.0
    %272 = vmatprep.subr.mxu0 0.0
    %273 = vmatpush1.msra.mxu0 0.0
    %274 = vmatprep.subr.mxu0 0.0
    %275 = vmatpush1.msra.mxu0 0.0
    %276 = vmatprep.subr.mxu0 0.0
    %277 = vmatpush1.msra.mxu0 0.0
    %278 = vmatprep.mubr.f32.mxu0 0.0
    %279 = vmatmul.mubr.f32.gmra.mrb[0].mxu0 %v212
    %v280 = vpop.f32.mrb[0].mxu0
    %v281 = vadd.f32 0.0, %v280
    %v282 = vpop.f32.mrb[0].mxu0
    %283 = vdwg.mxu0
    %v284 = vadd.f32 %v213, %v281
    %285 = vst [vmem:[#allocation2] sm:$0xff] %v284
    // Predicated region
    $region30: #{noisy_linear.1} parent=1 // pred_check
      %p286 = pneg %p24
    $region31: #{noisy_linear.1} parent=1 // pred_check_branch
      %288 = sbr.rel (%p286) target = $region33
    $region32: #{noisy_linear.1} parent=1 // pred_region
      %v289 = vld [vmem:[#allocation2] sm:$0xff]
      %v290 = vld [vmem:[%s5] sm:$0x1]
      %v292 = vlaneseq
      %v293 = vshrl.u32 %v292, 7
      %v294 = vsub.s32 0, %v293
      %v295 = vrot.slane %v290, %v294
      %v297 = vadd.f32 %v289, %v295
      %298 = vst [vmem:[#allocation3] sm:$0xff] %v297
    $region33: #{noisy_linear.1} parent=1 // pred_fallthru
      _
    // Predicated region
    $region34: #{noisy_linear.1} parent=1 // pred_check
      _
    $region35: #{noisy_linear.1} parent=1 // pred_check_branch
      %300 = sbr.rel (0) target = $region37
    $region36: #{noisy_linear.1} parent=1 // pred_region
      %s302 = ssub.s32 128, 128
      %303 = vsyncadd [#allocation4], %s302
      %s305 = sshll.u32 [#allocation3], 4
      %s306 = int_to_ptr.vmem [resolvable:$true] %s305
      %308 = dma.vmem_to_hbm [thread:$0]  %s306, 128, %s6, [#allocation4]
    $region37: #{noisy_linear.1} parent=1 // pred_fallthru
      _
    // Predicated region
    $region38: #{noisy_linear.1} parent=1 // pred_check
      _
    $region39: #{noisy_linear.1} parent=1 // pred_check_branch
      %310 = sbr.rel (0) target = $region41
    $region40: #{noisy_linear.1} parent=1 // pred_region
      %311 = dma.done [#allocation4], 128
    $region41: #{noisy_linear.1} parent=1 // pred_fallthru
      _
    %312 = vsyncpa [#allocation4], 1

</llo_original>
